<compile_context>
chip_gen: v7x
topology: tpu7x:2x2x1
jax: 0.10.0
libtpu: 0.0.40
codegen_flags: <defaults>
</compile_context>

<pallas_src>
import math
import numpy as np

import jax
import jax.numpy as jnp
from jax.experimental import pallas as pl
from jax.experimental.pallas import tpu as pltpu


HEAD_LANES = 128          # per-head lane segment width in the packed output
NEG_BIAS = -1.0e30        # bias on pad output lanes -> exp() == 0, softmax untouched


def _round_up(x, m):
    return ((x + m - 1) // m) * m


# ------------------------------------------------------------------
# Pallas kernel: both LatentEncoder branches, both attention heads
# ------------------------------------------------------------------
def _encoder_kernel(inv_t_ref,               # (1, 1)  SMEM: 1 / temperature
                    xf_ref,                  # (TILE_N, K_f)   bf16 feature slab
                    xds_ref,                 # (TILE_N, 8)     bf16 [deltas | scale | 0]
                    w_in_ref, w_ds_ref,      # (K_f, 2C) bf16, (8, 2C) bf16
                    b_in_ref,                # (1, 2C)  f32 (pre-summed 3 biases)
                    w1_ref, b1_ref,          # (2C, 2H) bf16, (1, 2H) f32  block-diag MLP-1
                    w2_ref, b2_ref,          # (2H, 256) bf16, (1, 256) f32 block-diag MLP-2
                    out_ref):                # (TILE_N, 256) f32 packed [cls | bbox] alphas
    f32 = jnp.float32
    inv_t = inv_t_ref[0, 0]

    # Fused input projection: feature-Linear + deltas-Linear + scale-Linear, one bias.
    z = (jnp.dot(xf_ref[...], w_in_ref[...], preferred_element_type=f32)
         + jnp.dot(xds_ref[...], w_ds_ref[...], preferred_element_type=f32)
         + b_in_ref[...])

    # Block-diagonal attention MLP: cls head in lanes [0,H), bbox head in [H,2H) of h.
    h = jnp.maximum(
        jnp.dot(z.astype(w1_ref.dtype), w1_ref[...], preferred_element_type=f32)
        + b1_ref[...], 0.0)
    s = (jnp.dot(h.astype(w2_ref.dtype), w2_ref[...], preferred_element_type=f32)
         + b2_ref[...]) * inv_t                       # == scores / temperature

    # Two segmented softmaxes over lane segments [0,128) (cls) and [128,256) (bbox).
    half = s.shape[-1] // 2
    lane = jax.lax.broadcasted_iota(jnp.int32, s.shape, 1)
    is_bbox = lane >= half
    m_cls = jnp.max(jnp.where(is_bbox, -jnp.inf, s), axis=-1, keepdims=True)
    m_bbox = jnp.max(jnp.where(is_bbox, s, -jnp.inf), axis=-1, keepdims=True)
    e = jnp.exp(s - jnp.where(is_bbox, m_bbox, m_cls))
    sum_cls = jnp.sum(jnp.where(is_bbox, 0.0, e), axis=-1, keepdims=True)
    sum_bbox = jnp.sum(jnp.where(is_bbox, e, 0.0), axis=-1, keepdims=True)
    # Reciprocal on the two (TILE_N,1) sums only (EUP slot), broadcast via one select.
    r_cls = pl.reciprocal(sum_cls, approx=True)
    r_bbox = pl.reciprocal(sum_bbox, approx=True)
    out_ref[...] = e * jnp.where(is_bbox, r_bbox, r_cls)


# ------------------------------------------------------------------
# Wrapper-side weight plumbing (done ONCE per model, not per forward)
# ------------------------------------------------------------------
def fuse_branch_stack(params_list):
    """Fuse each branch's 3 input Linears + 2 attention MLPs and stack branches."""
    nb = len(params_list)
    nok = int(params_list[0]["w2c"].shape[0])
    cins = [int(p["wf"].shape[1]) for p in params_list]
    couts = [int(p["wf"].shape[0]) // 2 for p in params_list]
    hids = [int(p["w1c"].shape[0]) for p in params_list]
    kf = _round_up(max(cins), 128)        # feature K padded to 128 only (no extra block)
    c = max(couts)
    hd = max(hids)
    c2, h2, out_l = 2 * c, 2 * hd, 2 * HEAD_LANES

    w_in = np.zeros((nb, kf, c2), np.float32)
    w_ds = np.zeros((nb, 8, c2), np.float32)
    b_in = np.zeros((nb, 1, c2), np.float32)
    w1 = np.zeros((nb, c2, h2), np.float32)
    b1 = np.zeros((nb, 1, h2), np.float32)
    w2 = np.zeros((nb, h2, out_l), np.float32)
    b2 = np.full((nb, 1, out_l), NEG_BIAS, np.float32)   # pad lanes -> exp() == 0

    for b, p in enumerate(params_list):
        cin, cb, hb = cins[b], couts[b], hids[b]
        wf = np.asarray(p["wf"], np.float32)              # (2cb, cin)
        wd = np.asarray(p["wd"], np.float32)              # (2cb, 4)
        ws = np.asarray(p["ws"], np.float32)              # (2cb, 1)
        bsum = np.asarray(p["bf"], np.float32) + np.asarray(p["bd"], np.float32) \
            + np.asarray(p["bs"], np.float32)             # (2cb,)

        # torch.chunk halves routed to separate lane segments [0,c) / [c,2c) of z.
        w_in[b, :cin, :cb] = wf[:cb].T
        w_in[b, :cin, c:c + cb] = wf[cb:].T
        w_ds[b, :4, :cb] = wd[:cb].T
        w_ds[b, :4, c:c + cb] = wd[cb:].T
        w_ds[b, 4, :cb] = ws[:cb, 0]
        w_ds[b, 4, c:c + cb] = ws[cb:, 0]
        b_in[b, 0, :cb] = bsum[:cb]
        b_in[b, 0, c:c + cb] = bsum[cb:]

        # Block-diagonal attention MLPs (cls head / bbox head).
        # NOTE: at production C the fused 2C x 2H matmul does 2x the FLOPs of two C x H
        # matmuls; only worth revisiting if the MXU becomes the binding unit.
        w1[b, :cb, :hb] = np.asarray(p["w1c"], np.float32).T
        w1[b, c:c + cb, hd:hd + hb] = np.asarray(p["w1b"], np.float32).T
        b1[b, 0, :hb] = np.asarray(p["b1c"], np.float32)
        b1[b, 0, hd:hd + hb] = np.asarray(p["b1b"], np.float32)

        w2[b, :hb, :nok] = np.asarray(p["w2c"], np.float32).T
        w2[b, hd:hd + hb, HEAD_LANES:HEAD_LANES + nok] = np.asarray(p["w2b"], np.float32).T
        b2[b, 0, :nok] = np.asarray(p["b2c"], np.float32)
        b2[b, 0, HEAD_LANES:HEAD_LANES + nok] = np.asarray(p["b2b"], np.float32)

    return dict(
        w_in=jnp.asarray(w_in, jnp.bfloat16),
        w_ds=jnp.asarray(w_ds, jnp.bfloat16),
        b_in=jnp.asarray(b_in, jnp.float32),
        w1=jnp.asarray(w1, jnp.bfloat16),
        b1=jnp.asarray(b1, jnp.float32),
        w2=jnp.asarray(w2, jnp.bfloat16),
        b2=jnp.asarray(b2, jnp.float32),
        nok=nok,
    )


# ------------------------------------------------------------------
# Both branches in one pallas_call
# ------------------------------------------------------------------
def encode_branches(branch_inputs, fused, temperature, *, tile_n=512):
    """branch_inputs: list of (feature, deltas, scale) per branch (rpn, roi).
    Returns per-branch (cls_alphas, bbox_alphas) with their real row counts."""
    nb, kf, c2 = fused["w_in"].shape
    h2 = fused["w1"].shape[2]
    out_l = fused["w2"].shape[2]
    nok = fused["nok"]

    ns = [int(f.shape[0]) for f, _, _ in branch_inputs]
    n_pad = _round_up(max(max(ns), 8), 8)
    tn = max(8, min(_round_up(tile_n, 8), n_pad))
    n_pad = _round_up(n_pad, tn)

    # Pack activations (bf16): feature slab padded to kf lanes, [deltas|scale] to 8 lanes.
    xf = jnp.zeros((nb, n_pad, kf), jnp.bfloat16)
    xds = jnp.zeros((nb, n_pad, 8), jnp.bfloat16)
    for b, (f, d, s) in enumerate(branch_inputs):
        n, cin = f.shape
        xf = xf.at[b, :n, :cin].set(f.astype(jnp.bfloat16))
        xds = xds.at[b, :n, :4].set(d.astype(jnp.bfloat16))
        xds = xds.at[b, :n, 4].set(s.reshape(-1).astype(jnp.bfloat16))

    inv_t = jnp.full((1, 1), 1.0 / float(temperature), jnp.float32)

    grid = (nb, n_pad // tn)
    out = pl.pallas_call(
        _encoder_kernel,
        out_shape=jax.ShapeDtypeStruct((nb, n_pad, out_l), jnp.float32),
        grid=grid,
        in_specs=[
            pl.BlockSpec(memory_space=pltpu.MemorySpace.SMEM),          # 1/temperature
            pl.BlockSpec((None, tn, kf), lambda b, i: (b, i, 0)),       # feature tiles
            pl.BlockSpec((None, tn, 8), lambda b, i: (b, i, 0)),        # [deltas|scale]
            pl.BlockSpec((None, kf, c2), lambda b, i: (b, 0, 0)),       # per-branch weights
            pl.BlockSpec((None, 8, c2), lambda b, i: (b, 0, 0)),
            pl.BlockSpec((None, 1, c2), lambda b, i: (b, 0, 0)),
            pl.BlockSpec((None, c2, h2), lambda b, i: (b, 0, 0)),
            pl.BlockSpec((None, 1, h2), lambda b, i: (b, 0, 0)),
            pl.BlockSpec((None, h2, out_l), lambda b, i: (b, 0, 0)),
            pl.BlockSpec((None, 1, out_l), lambda b, i: (b, 0, 0)),
        ],
        out_specs=pl.BlockSpec((None, tn, out_l), lambda b, i: (b, i, 0)),
        compiler_params=pltpu.CompilerParams(
            dimension_semantics=("parallel", "parallel")),
    )(inv_t, xf, xds, fused["w_in"], fused["w_ds"], fused["b_in"],
      fused["w1"], fused["b1"], fused["w2"], fused["b2"])

    results = []
    for b, n in enumerate(ns):
        cls_a = out[b, :n, :nok]
        bbox_a = out[b, :n, HEAD_LANES:HEAD_LANES + nok]
        results.append((cls_a, bbox_a))
    return results


# ------------------------------------------------------------------
# Parameter construction (deterministic, PyTorch-Linear-style init)
# ------------------------------------------------------------------
def _linear(key, in_f, out_f):
    k1, k2 = jax.random.split(key)
    bound = 1.0 / math.sqrt(in_f)
    w = jax.random.uniform(k1, (out_f, in_f), jnp.float32, -bound, bound)
    b = jax.random.uniform(k2, (out_f,), jnp.float32, -bound, bound)
    return w, b


def init_branch_params(key, c_in, c_out, hidden, nok):
    keys = jax.random.split(key, 7)
    wf, bf = _linear(keys[0], c_in, 2 * c_out)     # rpn_feature / roi_feature
    wd, bd = _linear(keys[1], 4, 2 * c_out)        # *_deltas
    ws, bs = _linear(keys[2], 1, 2 * c_out)        # *_scale
    w1c, b1c = _linear(keys[3], c_out, hidden)     # cls attention (AttentionLayerWoGP)
    w2c, b2c = _linear(keys[4], hidden, nok)
    w1b, b1b = _linear(keys[5], c_out, hidden)     # bbox attention
    w2b, b2b = _linear(keys[6], hidden, nok)
    return dict(wf=wf, bf=bf, wd=wd, bd=bd, ws=ws, bs=bs,
                w1c=w1c, b1c=b1c, w2c=w2c, b2c=b2c,
                w1b=w1b, b1b=b1b, w2b=w2b, b2b=b2b)


# ------------------------------------------------------------------
# LatentEncoder.forward
# ------------------------------------------------------------------
def latent_encoder_forward(fused_params, support_feature, *, curr_iter, max_iter,
                           temperature_cfg):
    nok = fused_params["nok"]
    if support_feature is None:
        rpn_cls = jnp.ones((nok,), jnp.float32) / nok
        rpn_bbox = jnp.ones((nok,), jnp.float32) / nok
        roi_cls = jnp.ones((1, nok), jnp.float32) / nok
        roi_bbox = jnp.ones((1, nok), jnp.float32) / nok
        latent = {"proposal": [jax.nn.sigmoid(rpn_cls), jax.nn.sigmoid(rpn_bbox)],
                  "roi": [jax.nn.sigmoid(roi_cls), jax.nn.sigmoid(roi_bbox)]}
        return latent, None, {}

    progress = (max_iter - curr_iter) / max_iter
    temperature = max(1.0, temperature_cfg * progress)

    prop = support_feature["proposal"]
    roi = support_feature["roi"]

    # Host-side unique of gt classes (class ids kept on host) computed BEFORE touching
    # any kernel output, so the single fused pallas_call dispatches without a sync.
    roi_class_np = np.asarray(roi["class"]).astype(np.int64)
    support_gt_class = np.unique(roi_class_np)          # sorted unique

    (rpn_cls_a, rpn_bbox_a), (roi_cls_a, roi_bbox_a) = encode_branches(
        [(prop["feature"], prop["deltas"], prop["scale"]),
         (roi["feature"], roi["deltas"], roi["scale"])],
        fused_params, temperature)

    loss = {}  # TODO(synk): cont_loss=True rank-loss path not implemented.

    # Per-class mean of roi_cls_alphas via a static-K one-hot built from host constants.
    onehot = jnp.asarray(roi_class_np[None, :] == support_gt_class[:, None], jnp.float32)
    counts = onehot.sum(axis=1, keepdims=True)
    roi_cls_per_class = (onehot @ roi_cls_a) / counts    # (K, nok)

    rpn_cls = rpn_cls_a.mean(axis=0)                     # (nok,)
    rpn_bbox = rpn_bbox_a.mean(axis=0)                   # (nok,)
    roi_bbox = roi_bbox_a.mean(axis=0).reshape(1, -1)    # (1, nok)

    latent = {
        "proposal": [jax.nn.sigmoid(rpn_cls), jax.nn.sigmoid(rpn_bbox)],
        "roi": [jax.nn.sigmoid(roi_cls_per_class), jax.nn.sigmoid(roi_bbox)],
    }
    return latent, jnp.asarray(support_gt_class, jnp.int32), loss


# ------------------------------------------------------------------
# Demo
# ------------------------------------------------------------------
if __name__ == "__main__":
    # small synthetic config
    RPN_IN = 32          # rpn_in_channels (conv_dims[0] == -1 -> rpn_out == rpn_in)
    ROI_SHAPE = 32       # roi feature dim
    REDUCE = 4
    NOK = 4              # number of dynamic kernels
    HIDDEN_RPN = max(1, RPN_IN // REDUCE)
    HIDDEN_ROI = max(1, ROI_SHAPE // REDUCE)
    MAX_ITER = 1000
    CURR_ITER = 500
    TEMPERATURE = 10.0

    N_RPN, N_ROI = 16, 12

    key = jax.random.PRNGKey(0)
    k_params, k_data = jax.random.split(key)
    kp1, kp2 = jax.random.split(k_params)
    raw_params = [
        init_branch_params(kp1, RPN_IN, RPN_IN, HIDDEN_RPN, NOK),      # rpn branch
        init_branch_params(kp2, ROI_SHAPE, ROI_SHAPE, HIDDEN_ROI, NOK),  # roi branch
    ]
    fused_params = fuse_branch_stack(raw_params)

    kd = jax.random.split(k_data, 6)
    support_feature = {
        "proposal": {
            "feature": jax.random.normal(kd[0], (N_RPN, RPN_IN), jnp.float32),
            "deltas": jax.random.normal(kd[1], (N_RPN, 4), jnp.float32),
            "scale": jax.random.uniform(kd[2], (N_RPN,), jnp.float32, 0.5, 2.0),
            "class": np.arange(N_RPN) % 3,          # host-side class ids (no device sync)
        },
        "roi": {
            "feature": jax.random.normal(kd[3], (N_ROI, ROI_SHAPE), jnp.float32),
            "deltas": jax.random.normal(kd[4], (N_ROI, 4), jnp.float32),
            "scale": jax.random.uniform(kd[5], (N_ROI,), jnp.float32, 0.5, 2.0),
            "class": np.arange(N_ROI) % 3,
        },
    }

    latent, gt_classes, loss = latent_encoder_forward(
        fused_params, support_feature,
        curr_iter=CURR_ITER, max_iter=MAX_ITER,
        temperature_cfg=TEMPERATURE)

    jax.block_until_ready(latent)

    # shape / sanity checks mirroring the PyTorch module
    n_classes = len(np.asarray(gt_classes))
    assert latent["proposal"][0].shape == (NOK,)
    assert latent["proposal"][1].shape == (NOK,)
    assert latent["roi"][0].shape == (n_classes, NOK)
    assert latent["roi"][1].shape == (1, NOK)
    for arrs in latent.values():
        for a in arrs:
            assert bool(jnp.all(jnp.isfinite(a)))
            assert bool(jnp.all((a > 0.0) & (a < 1.0)))   # sigmoid of softmax outputs

    print("KERNEL_OK")
</pallas_src>

<mosaic_0001>
module attributes {stable_mosaic.version = 11 : i64} {
  func.func @_encoder_kernel(%arg0: i32, %arg1: i32, %arg2: memref<1x1xf32, #tpu.memory_space<smem>>, %arg3: memref<1x16x128xbf16, #tpu.memory_space<vmem>>, %arg4: memref<1x16x8xbf16, #tpu.memory_space<vmem>>, %arg5: memref<1x128x64xbf16, #tpu.memory_space<vmem>>, %arg6: memref<1x8x64xbf16, #tpu.memory_space<vmem>>, %arg7: memref<1x1x64xf32, #tpu.memory_space<vmem>>, %arg8: memref<1x64x16xbf16, #tpu.memory_space<vmem>>, %arg9: memref<1x1x16xf32, #tpu.memory_space<vmem>>, %arg10: memref<1x16x256xbf16, #tpu.memory_space<vmem>>, %arg11: memref<1x1x256xf32, #tpu.memory_space<vmem>>, %arg12: memref<1x16x256xf32, #tpu.memory_space<vmem>>) attributes {dimension_semantics = [#tpu.dimension_semantics<parallel>, #tpu.dimension_semantics<parallel>], iteration_bounds = array<i64: 2, 1>, scalar_prefetch = 0 : i64, scratch_operands = 0 : i64, tpu.core_type = #tpu.core_type<tc>, window_params = [{transform_indices = @transform_0, window_bounds = array<i64: 1, 1>}, {transform_indices = @transform_1, window_bounds = array<i64: 1, 16, 128>}, {transform_indices = @transform_2, window_bounds = array<i64: 1, 16, 8>}, {transform_indices = @transform_3, window_bounds = array<i64: 1, 128, 64>}, {transform_indices = @transform_4, window_bounds = array<i64: 1, 8, 64>}, {transform_indices = @transform_5, window_bounds = array<i64: 1, 1, 64>}, {transform_indices = @transform_6, window_bounds = array<i64: 1, 64, 16>}, {transform_indices = @transform_7, window_bounds = array<i64: 1, 1, 16>}, {transform_indices = @transform_8, window_bounds = array<i64: 1, 16, 256>}, {transform_indices = @transform_9, window_bounds = array<i64: 1, 1, 256>}, {transform_indices = @transform_10, window_bounds = array<i64: 1, 16, 256>}]} {
    %c0 = arith.constant 0 : index
    %c0_0 = arith.constant 0 : index
    %0 = memref.load %arg2[%c0, %c0_0] : memref<1x1xf32, #tpu.memory_space<smem>>
    %c0_1 = arith.constant 0 : index
    %c0_2 = arith.constant 0 : index
    %c0_3 = arith.constant 0 : index
    %1 = vector.load %arg3[%c0_1, %c0_2, %c0_3] : memref<1x16x128xbf16, #tpu.memory_space<vmem>>, vector<1x16x128xbf16>
    %2 = vector.shape_cast %1 : vector<1x16x128xbf16> to vector<16x128xbf16>
    %c0_4 = arith.constant 0 : index
    %c0_5 = arith.constant 0 : index
    %c0_6 = arith.constant 0 : index
    %3 = vector.load %arg5[%c0_4, %c0_5, %c0_6] : memref<1x128x64xbf16, #tpu.memory_space<vmem>>, vector<1x128x64xbf16>
    %4 = vector.shape_cast %3 : vector<1x128x64xbf16> to vector<128x64xbf16>
    %cst = arith.constant dense<0.000000e+00> : vector<16x64xf32>
    %5 = tpu.matmul %2, %4, %cst {dimension_numbers = #tpu.dot_dimension_numbers<[1], [0], [0], [1], [0, 0, 1, 1], [], []>} : vector<16x128xbf16>, vector<128x64xbf16>, vector<16x64xf32> -> vector<16x64xf32>
    %c0_7 = arith.constant 0 : index
    %c0_8 = arith.constant 0 : index
    %c0_9 = arith.constant 0 : index
    %6 = vector.load %arg4[%c0_7, %c0_8, %c0_9] : memref<1x16x8xbf16, #tpu.memory_space<vmem>>, vector<1x16x8xbf16>
    %7 = vector.shape_cast %6 : vector<1x16x8xbf16> to vector<16x8xbf16>
    %c0_10 = arith.constant 0 : index
    %c0_11 = arith.constant 0 : index
    %c0_12 = arith.constant 0 : index
    %8 = vector.load %arg6[%c0_10, %c0_11, %c0_12] : memref<1x8x64xbf16, #tpu.memory_space<vmem>>, vector<1x8x64xbf16>
    %9 = vector.shape_cast %8 : vector<1x8x64xbf16> to vector<8x64xbf16>
    %cst_13 = arith.constant dense<0.000000e+00> : vector<16x64xf32>
    %10 = tpu.matmul %7, %9, %cst_13 {dimension_numbers = #tpu.dot_dimension_numbers<[1], [0], [0], [1], [0, 0, 1, 1], [], []>} : vector<16x8xbf16>, vector<8x64xbf16>, vector<16x64xf32> -> vector<16x64xf32>
    %11 = arith.addf %5, %10 : vector<16x64xf32>
    %c0_14 = arith.constant 0 : index
    %c0_15 = arith.constant 0 : index
    %c0_16 = arith.constant 0 : index
    %12 = vector.load %arg7[%c0_14, %c0_15, %c0_16] : memref<1x1x64xf32, #tpu.memory_space<vmem>>, vector<1x1x64xf32>
    %13 = vector.shape_cast %12 : vector<1x1x64xf32> to vector<1x64xf32>
    %14 = vector.broadcast %13 : vector<1x64xf32> to vector<16x64xf32>
    %15 = arith.addf %11, %14 : vector<16x64xf32>
    %16 = arith.truncf %15 : vector<16x64xf32> to vector<16x64xbf16>
    %c0_17 = arith.constant 0 : index
    %c0_18 = arith.constant 0 : index
    %c0_19 = arith.constant 0 : index
    %17 = vector.load %arg8[%c0_17, %c0_18, %c0_19] : memref<1x64x16xbf16, #tpu.memory_space<vmem>>, vector<1x64x16xbf16>
    %18 = vector.shape_cast %17 : vector<1x64x16xbf16> to vector<64x16xbf16>
    %cst_20 = arith.constant dense<0.000000e+00> : vector<16x16xf32>
    %19 = tpu.matmul %16, %18, %cst_20 {dimension_numbers = #tpu.dot_dimension_numbers<[1], [0], [0], [1], [0, 0, 1, 1], [], []>} : vector<16x64xbf16>, vector<64x16xbf16>, vector<16x16xf32> -> vector<16x16xf32>
    %c0_21 = arith.constant 0 : index
    %c0_22 = arith.constant 0 : index
    %c0_23 = arith.constant 0 : index
    %20 = vector.load %arg9[%c0_21, %c0_22, %c0_23] : memref<1x1x16xf32, #tpu.memory_space<vmem>>, vector<1x1x16xf32>
    %21 = vector.shape_cast %20 : vector<1x1x16xf32> to vector<1x16xf32>
    %22 = vector.broadcast %21 : vector<1x16xf32> to vector<16x16xf32>
    %23 = arith.addf %19, %22 : vector<16x16xf32>
    %cst_24 = arith.constant 0.000000e+00 : f32
    %24 = vector.broadcast %cst_24 : f32 to vector<16x16xf32>
    %25 = arith.maximumf %23, %24 : vector<16x16xf32>
    %26 = arith.truncf %25 : vector<16x16xf32> to vector<16x16xbf16>
    %c0_25 = arith.constant 0 : index
    %c0_26 = arith.constant 0 : index
    %c0_27 = arith.constant 0 : index
    %27 = vector.load %arg10[%c0_25, %c0_26, %c0_27] : memref<1x16x256xbf16, #tpu.memory_space<vmem>>, vector<1x16x256xbf16>
    %28 = vector.shape_cast %27 : vector<1x16x256xbf16> to vector<16x256xbf16>
    %cst_28 = arith.constant dense<0.000000e+00> : vector<16x256xf32>
    %29 = tpu.matmul %26, %28, %cst_28 {dimension_numbers = #tpu.dot_dimension_numbers<[1], [0], [0], [1], [0, 0, 1, 1], [], []>} : vector<16x16xbf16>, vector<16x256xbf16>, vector<16x256xf32> -> vector<16x256xf32>
    %c0_29 = arith.constant 0 : index
    %c0_30 = arith.constant 0 : index
    %c0_31 = arith.constant 0 : index
    %30 = vector.load %arg11[%c0_29, %c0_30, %c0_31] : memref<1x1x256xf32, #tpu.memory_space<vmem>>, vector<1x1x256xf32>
    %31 = vector.shape_cast %30 : vector<1x1x256xf32> to vector<1x256xf32>
    %32 = vector.broadcast %31 : vector<1x256xf32> to vector<16x256xf32>
    %33 = arith.addf %29, %32 : vector<16x256xf32>
    %34 = vector.broadcast %0 : f32 to vector<16x256xf32>
    %35 = arith.mulf %33, %34 : vector<16x256xf32>
    %36 = tpu.iota {dimensions = array<i32: 1>} : vector<16x256xi32>
    %c128_i32 = arith.constant 128 : i32
    %37 = vector.broadcast %c128_i32 : i32 to vector<16x256xi32>
    %38 = arith.cmpi sge, %36, %37 : vector<16x256xi32>
    %cst_32 = arith.constant 0xFF800000 : f32
    %39 = vector.broadcast %cst_32 : f32 to vector<16x256xf32>
    %40 = arith.select %38, %39, %35 : vector<16x256xi1>, vector<16x256xf32>
    %cst_33 = arith.constant dense<0xFF800000> : vector<16xf32>
    %41 = vector.multi_reduction <maximumf>, %40, %cst_33 [1] : vector<16x256xf32> to vector<16xf32>
    %42 = vector.shape_cast %41 : vector<16xf32> to vector<16x1xf32>
    %cst_34 = arith.constant 0xFF800000 : f32
    %43 = vector.broadcast %cst_34 : f32 to vector<16x256xf32>
    %44 = arith.select %38, %35, %43 : vector<16x256xi1>, vector<16x256xf32>
    %cst_35 = arith.constant dense<0xFF800000> : vector<16xf32>
    %45 = vector.multi_reduction <maximumf>, %44, %cst_35 [1] : vector<16x256xf32> to vector<16xf32>
    %46 = vector.shape_cast %45 : vector<16xf32> to vector<16x1xf32>
    %47 = vector.shape_cast %46 : vector<16x1xf32> to vector<16x1xf32>
    %48 = vector.broadcast %47 : vector<16x1xf32> to vector<16x256xf32>
    %49 = vector.shape_cast %42 : vector<16x1xf32> to vector<16x1xf32>
    %50 = vector.broadcast %49 : vector<16x1xf32> to vector<16x256xf32>
    %51 = arith.select %38, %48, %50 : vector<16x256xi1>, vector<16x256xf32>
    %52 = arith.subf %35, %51 : vector<16x256xf32>
    %53 = math.exp %52 : vector<16x256xf32>
    %cst_36 = arith.constant 0.000000e+00 : f32
    %54 = vector.broadcast %cst_36 : f32 to vector<16x256xf32>
    %55 = arith.select %38, %54, %53 : vector<16x256xi1>, vector<16x256xf32>
    %cst_37 = arith.constant dense<0.000000e+00> : vector<16xf32>
    %56 = vector.multi_reduction <add>, %55, %cst_37 [1] : vector<16x256xf32> to vector<16xf32>
    %57 = vector.shape_cast %56 : vector<16xf32> to vector<16x1xf32>
    %cst_38 = arith.constant 0.000000e+00 : f32
    %58 = vector.broadcast %cst_38 : f32 to vector<16x256xf32>
    %59 = arith.select %38, %53, %58 : vector<16x256xi1>, vector<16x256xf32>
    %cst_39 = arith.constant dense<0.000000e+00> : vector<16xf32>
    %60 = vector.multi_reduction <add>, %59, %cst_39 [1] : vector<16x256xf32> to vector<16xf32>
    %61 = vector.shape_cast %60 : vector<16xf32> to vector<16x1xf32>
    %62 = tpu.reciprocal %57 {approx = true} : vector<16x1xf32> -> vector<16x1xf32>
    %63 = tpu.reciprocal %61 {approx = true} : vector<16x1xf32> -> vector<16x1xf32>
    %64 = vector.shape_cast %63 : vector<16x1xf32> to vector<16x1xf32>
    %65 = vector.broadcast %64 : vector<16x1xf32> to vector<16x256xf32>
    %66 = vector.shape_cast %62 : vector<16x1xf32> to vector<16x1xf32>
    %67 = vector.broadcast %66 : vector<16x1xf32> to vector<16x256xf32>
    %68 = arith.select %38, %65, %67 : vector<16x256xi1>, vector<16x256xf32>
    %69 = arith.mulf %53, %68 : vector<16x256xf32>
    %c0_40 = arith.constant 0 : index
    %c0_41 = arith.constant 0 : index
    %c0_42 = arith.constant 0 : index
    %70 = vector.load %arg12[%c0_40, %c0_41, %c0_42] : memref<1x16x256xf32, #tpu.memory_space<vmem>>, vector<1x16x256xf32>
    %71 = vector.shape_cast %70 : vector<1x16x256xf32> to vector<16x256xf32>
    %72 = vector.shape_cast %69 : vector<16x256xf32> to vector<1x16x256xf32>
    tpu.vector_store %arg12[%c0_40, %c0_41, %c0_42], %72 {strides = array<i32>} : memref<1x16x256xf32, #tpu.memory_space<vmem>>, vector<1x16x256xf32>,
    return
  }
  func.func @transform_0(%arg0: i32, %arg1: i32) -> (i32, i32) {
    %c0_i32 = arith.constant 0 : i32
    %c0_i32_0 = arith.constant 0 : i32
    %c0_i32_1 = arith.constant 0 : i32
    return %c0_i32, %c0_i32_0 : i32, i32
  }
  func.func @transform_1(%arg0: i32, %arg1: i32) -> (i32, i32, i32) {
    %c0_i32 = arith.constant 0 : i32
    %c0_i32_0 = arith.constant 0 : i32
    return %arg0, %arg1, %c0_i32 : i32, i32, i32
  }
  func.func @transform_2(%arg0: i32, %arg1: i32) -> (i32, i32, i32) {
    %c0_i32 = arith.constant 0 : i32
    %c0_i32_0 = arith.constant 0 : i32
    return %arg0, %arg1, %c0_i32 : i32, i32, i32
  }
  func.func @transform_3(%arg0: i32, %arg1: i32) -> (i32, i32, i32) {
    %c0_i32 = arith.constant 0 : i32
    %c0_i32_0 = arith.constant 0 : i32
    %c0_i32_1 = arith.constant 0 : i32
    return %arg0, %c0_i32, %c0_i32_0 : i32, i32, i32
  }
  func.func @transform_4(%arg0: i32, %arg1: i32) -> (i32, i32, i32) {
    %c0_i32 = arith.constant 0 : i32
    %c0_i32_0 = arith.constant 0 : i32
    %c0_i32_1 = arith.constant 0 : i32
    return %arg0, %c0_i32, %c0_i32_0 : i32, i32, i32
  }
  func.func @transform_5(%arg0: i32, %arg1: i32) -> (i32, i32, i32) {
    %c0_i32 = arith.constant 0 : i32
    %c0_i32_0 = arith.constant 0 : i32
    %c0_i32_1 = arith.constant 0 : i32
    return %arg0, %c0_i32, %c0_i32_0 : i32, i32, i32
  }
  func.func @transform_6(%arg0: i32, %arg1: i32) -> (i32, i32, i32) {
    %c0_i32 = arith.constant 0 : i32
    %c0_i32_0 = arith.constant 0 : i32
    %c0_i32_1 = arith.constant 0 : i32
    return %arg0, %c0_i32, %c0_i32_0 : i32, i32, i32
  }
  func.func @transform_7(%arg0: i32, %arg1: i32) -> (i32, i32, i32) {
    %c0_i32 = arith.constant 0 : i32
    %c0_i32_0 = arith.constant 0 : i32
    %c0_i32_1 = arith.constant 0 : i32
    return %arg0, %c0_i32, %c0_i32_0 : i32, i32, i32
  }
  func.func @transform_8(%arg0: i32, %arg1: i32) -> (i32, i32, i32) {
    %c0_i32 = arith.constant 0 : i32
    %c0_i32_0 = arith.constant 0 : i32
    %c0_i32_1 = arith.constant 0 : i32
    return %arg0, %c0_i32, %c0_i32_0 : i32, i32, i32
  }
  func.func @transform_9(%arg0: i32, %arg1: i32) -> (i32, i32, i32) {
    %c0_i32 = arith.constant 0 : i32
    %c0_i32_0 = arith.constant 0 : i32
    %c0_i32_1 = arith.constant 0 : i32
    return %arg0, %c0_i32, %c0_i32_0 : i32, i32, i32
  }
  func.func @transform_10(%arg0: i32, %arg1: i32) -> (i32, i32, i32) {
    %c0_i32 = arith.constant 0 : i32
    %c0_i32_0 = arith.constant 0 : i32
    return %arg0, %arg1, %c0_i32 : i32, i32, i32
  }
}

</mosaic_0001>

<llo_original>
// kernel: tpu_custom_call.1
$region0: #{tpu_custom_call.1}
  #allocation0 [shape = 'u32[]', space=smem, size = 0x4, offset = 0x4, fixed_abs, tag = 'smem constant byte address 0x4 - core index']
  #allocation1 [shape = 'u32[144,128]{1,0:T(1,128)}', space=vmem, size = 0x12000, scoped, tag = 'internal scratch']
  #allocation2 [shape = 'f32[1,1]{1,0:T(1,128)S(6)}', space=smem, size = 0x200, scoped, tag = 'scoped memory for tpu_custom_call.1']
  %s0 = inlined_call_operand.<no memory space> [shape: f32[1,1], index: 0, kind: input, shape index: {}]
  %s1 = inlined_call_operand.vmem [shape: bf16[2,16,128], index: 1, kind: input, shape index: {}]
  %s2 = inlined_call_operand.vmem [shape: bf16[2,16,8], index: 2, kind: input, shape index: {}]
  %s3 = inlined_call_operand.vmem [shape: bf16[2,128,64], index: 3, kind: input, shape index: {}]
  %s4 = inlined_call_operand.vmem [shape: bf16[2,8,64], index: 4, kind: input, shape index: {}]
  %s5 = inlined_call_operand.vmem [shape: f32[2,1,64], index: 5, kind: input, shape index: {}]
  %s6 = inlined_call_operand.vmem [shape: bf16[2,64,16], index: 6, kind: input, shape index: {}]
  %s7 = inlined_call_operand.vmem [shape: f32[2,1,16], index: 7, kind: input, shape index: {}]
  %s8 = inlined_call_operand.vmem [shape: bf16[2,16,256], index: 8, kind: input, shape index: {}]
  %s9 = inlined_call_operand.vmem [shape: f32[2,1,256], index: 9, kind: input, shape index: {}]
  %s10 = inlined_call_operand.hbm [shape: f32[2,16,256], index: 10, kind: output, shape index: {}]
  %s11 = sld [smem:[#allocation0]]
  $region73: #{tpu_custom_call.1} parent=0
    _
  %s13 = ssub.s32 1, %s11
  %s14 = scalar_select 0, %s13, %s11
  %15 = sst [smem:[#allocation2]] %s0
  $region1: #{tpu_custom_call.1} parent=0
    #allocation3 [shape = 'u8[32768]{0}', space=vmem, size = 0x8000, scoped, tag = 'output window, operand 0']
    #allocation4 [shape = 's32[2]{0}', space=sflag, size = 0x8, scoped, tag = 'scoped memory for tpu_custom_call.1']
    %16 = vsyncpa [#allocation4], 0
    %s17 = scalar_lea.sflag [#allocation4], 1
    %18 = vsyncpa %s17, 0
    loop: start=0, step=1, limit=4
    $region2: #{tpu_custom_call.1} parent=1 // loop_pre_header
      _
    $region3: #{tpu_custom_call.1} parent=1 // loop_header
      %s20 = sphi 0, %s24
      %p21 = scmp.ge.s32.totalorder %s20, 4
      %s27 = sphi 0, %s39
      %s28 = sphi 0, %s35
      %s29 = sphi 0, %s27
      %s30 = sphi 0, %s28
      %s31 = sphi 0, %s29
      %s32 = sphi 0, %s30
      %s40 = sphi 0, %s40
      %s42 = sphi 0, %s40
      %s43 = sphi 0, %s42
      %s57 = sphi 0, %s43
      %s65 = sphi 0, %s67
      %s68 = sphi 0, %s65
      %s69 = sphi 0, %s68
      %s85 = sphi 0, %s69
      %s93 = sphi 0, %s95
      %s96 = sphi 0, %s93
      %s97 = sphi 0, %s96
      %s113 = sphi 0, %s97
      %s119 = sphi 0, %s121
      %s122 = sphi 0, %s119
      %s123 = sphi 0, %s122
      %s139 = sphi 0, %s123
      %s145 = sphi 0, %s147
      %s148 = sphi 0, %s145
      %s149 = sphi 0, %s148
      %s165 = sphi 0, %s149
      %s171 = sphi 0, %s173
      %s174 = sphi 0, %s171
      %s175 = sphi 0, %s174
      %s191 = sphi 0, %s175
      %s197 = sphi 0, %s199
      %s200 = sphi 0, %s197
      %s201 = sphi 0, %s200
      %s217 = sphi 0, %s201
      %s223 = sphi 0, %s225
      %s226 = sphi 0, %s223
      %s227 = sphi 0, %s226
      %s243 = sphi 0, %s227
      %s249 = sphi 0, %s251
      %s252 = sphi 0, %s249
      %s253 = sphi 0, %s252
      %s269 = sphi 0, %s253
      %s275 = sphi 0, %s277
      %s278 = sphi 0, %s275
      %s279 = sphi 0, %s278
      %s295 = sphi 0, %s279
      %s303 = sphi 0, %s305
      %s306 = sphi 0, %s303
      %s307 = sphi 0, %s306
      %s323 = sphi 0, %s307
    $region4: #{tpu_custom_call.1} parent=1 // loop_header_branch
      %23 = sbr.rel (%p21) target = $region8
    $region5: #{tpu_custom_call.1} parent=1 // loop_body
      %s25 = ssub.s32 %s20, 1
      %s26 = ssub.s32 %s20, 2
      %s33 = sadd.s32 1, %s28
      %p34 = scmp.ge.s32.totalorder %s33, 1
      %s35 = scalar_select %p34, 0, %s33
      %s36 = sadd.s32 1, %s27
      %s37 = scalar_select %p34, %s36, %s27
      %p38 = scmp.ge.s32.totalorder %s37, 2
      %s39 = scalar_select %p38, 0, %s37
      %s41 = sadd.s32 %s40, 1
      %p44 = scmp.eq.s32.totalorder %s20, 1
      %p45 = scmp.ne.s32.totalorder %s40, %s42
      %p46 = scmp.eq.s32.totalorder %s20, 0
      %p47 = por %p45, %p46
      %p48 = scmp.ne.s32.totalorder %s40, %s42
      %p49 = scmp.eq.s32.totalorder %s25, 1
      %p50 = por %p48, %p49
      %p51 = scmp.ne.s32.totalorder %s42, %s43
      %p52 = scmp.eq.s32.totalorder %s25, 0
      %p53 = por %p51, %p52
      %p54 = scmp.ne.s32.totalorder %s42, %s43
      %p55 = scmp.eq.s32.totalorder %s26, 1
      %p56 = por %p54, %p55
      %p58 = scmp.ne.s32.totalorder %s43, %s57
      %p59 = scmp.eq.s32.totalorder %s26, 0
      %p60 = por %p58, %p59
      %s61 = ssub.s32 %s27, %s39
      %s62 = ssub.s32 %s28, %s35
      %s63 = sor.u32 %s61, %s62
      %p64 = scmp.eq.s32.totalorder %s63, 0
      %s66 = sadd.s32 %s65, 1
      %s67 = scalar_select %p64, %s65, %s66
      %p70 = pneg %p64
      %p71 = scmp.eq.s32.totalorder %s20, 1
      %p72 = por %p70, %p71
      %p73 = scmp.ne.s32.totalorder %s65, %s68
      %p74 = scmp.eq.s32.totalorder %s20, 0
      %p75 = por %p73, %p74
      %p76 = scmp.ne.s32.totalorder %s65, %s68
      %p77 = scmp.eq.s32.totalorder %s25, 1
      %p78 = por %p76, %p77
      %p79 = scmp.ne.s32.totalorder %s68, %s69
      %p80 = scmp.eq.s32.totalorder %s25, 0
      %p81 = por %p79, %p80
      %p82 = scmp.ne.s32.totalorder %s68, %s69
      %p83 = scmp.eq.s32.totalorder %s26, 1
      %p84 = por %p82, %p83
      %p86 = scmp.ne.s32.totalorder %s69, %s85
      %p87 = scmp.eq.s32.totalorder %s26, 0
      %p88 = por %p86, %p87
      %s89 = ssub.s32 %s27, %s39
      %s90 = ssub.s32 %s28, %s35
      %s91 = sor.u32 %s89, %s90
      %p92 = scmp.eq.s32.totalorder %s91, 0
      %s94 = sadd.s32 %s93, 1
      %s95 = scalar_select %p92, %s93, %s94
      %p98 = pneg %p92
      %p99 = scmp.eq.s32.totalorder %s20, 1
      %p100 = por %p98, %p99
      %p101 = scmp.ne.s32.totalorder %s93, %s96
      %p102 = scmp.eq.s32.totalorder %s20, 0
      %p103 = por %p101, %p102
      %p104 = scmp.ne.s32.totalorder %s93, %s96
      %p105 = scmp.eq.s32.totalorder %s25, 1
      %p106 = por %p104, %p105
      %p107 = scmp.ne.s32.totalorder %s96, %s97
      %p108 = scmp.eq.s32.totalorder %s25, 0
      %p109 = por %p107, %p108
      %p110 = scmp.ne.s32.totalorder %s96, %s97
      %p111 = scmp.eq.s32.totalorder %s26, 1
      %p112 = por %p110, %p111
      %p114 = scmp.ne.s32.totalorder %s97, %s113
      %p115 = scmp.eq.s32.totalorder %s26, 0
      %p116 = por %p114, %p115
      %s117 = ssub.s32 %s27, %s39
      %p118 = scmp.eq.s32.totalorder %s117, 0
      %s120 = sadd.s32 %s119, 1
      %s121 = scalar_select %p118, %s119, %s120
      %p124 = pneg %p118
      %p125 = scmp.eq.s32.totalorder %s20, 1
      %p126 = por %p124, %p125
      %p127 = scmp.ne.s32.totalorder %s119, %s122
      %p128 = scmp.eq.s32.totalorder %s20, 0
      %p129 = por %p127, %p128
      %p130 = scmp.ne.s32.totalorder %s119, %s122
      %p131 = scmp.eq.s32.totalorder %s25, 1
      %p132 = por %p130, %p131
      %p133 = scmp.ne.s32.totalorder %s122, %s123
      %p134 = scmp.eq.s32.totalorder %s25, 0
      %p135 = por %p133, %p134
      %p136 = scmp.ne.s32.totalorder %s122, %s123
      %p137 = scmp.eq.s32.totalorder %s26, 1
      %p138 = por %p136, %p137
      %p140 = scmp.ne.s32.totalorder %s123, %s139
      %p141 = scmp.eq.s32.totalorder %s26, 0
      %p142 = por %p140, %p141
      %s143 = ssub.s32 %s27, %s39
      %p144 = scmp.eq.s32.totalorder %s143, 0
      %s146 = sadd.s32 %s145, 1
      %s147 = scalar_select %p144, %s145, %s146
      %p150 = pneg %p144
      %p151 = scmp.eq.s32.totalorder %s20, 1
      %p152 = por %p150, %p151
      %p153 = scmp.ne.s32.totalorder %s145, %s148
      %p154 = scmp.eq.s32.totalorder %s20, 0
      %p155 = por %p153, %p154
      %p156 = scmp.ne.s32.totalorder %s145, %s148
      %p157 = scmp.eq.s32.totalorder %s25, 1
      %p158 = por %p156, %p157
      %p159 = scmp.ne.s32.totalorder %s148, %s149
      %p160 = scmp.eq.s32.totalorder %s25, 0
      %p161 = por %p159, %p160
      %p162 = scmp.ne.s32.totalorder %s148, %s149
      %p163 = scmp.eq.s32.totalorder %s26, 1
      %p164 = por %p162, %p163
      %p166 = scmp.ne.s32.totalorder %s149, %s165
      %p167 = scmp.eq.s32.totalorder %s26, 0
      %p168 = por %p166, %p167
      %s169 = ssub.s32 %s27, %s39
      %p170 = scmp.eq.s32.totalorder %s169, 0
      %s172 = sadd.s32 %s171, 1
      %s173 = scalar_select %p170, %s171, %s172
      %p176 = pneg %p170
      %p177 = scmp.eq.s32.totalorder %s20, 1
      %p178 = por %p176, %p177
      %p179 = scmp.ne.s32.totalorder %s171, %s174
      %p180 = scmp.eq.s32.totalorder %s20, 0
      %p181 = por %p179, %p180
      %p182 = scmp.ne.s32.totalorder %s171, %s174
      %p183 = scmp.eq.s32.totalorder %s25, 1
      %p184 = por %p182, %p183
      %p185 = scmp.ne.s32.totalorder %s174, %s175
      %p186 = scmp.eq.s32.totalorder %s25, 0
      %p187 = por %p185, %p186
      %p188 = scmp.ne.s32.totalorder %s174, %s175
      %p189 = scmp.eq.s32.totalorder %s26, 1
      %p190 = por %p188, %p189
      %p192 = scmp.ne.s32.totalorder %s175, %s191
      %p193 = scmp.eq.s32.totalorder %s26, 0
      %p194 = por %p192, %p193
      %s195 = ssub.s32 %s27, %s39
      %p196 = scmp.eq.s32.totalorder %s195, 0
      %s198 = sadd.s32 %s197, 1
      %s199 = scalar_select %p196, %s197, %s198
      %p202 = pneg %p196
      %p203 = scmp.eq.s32.totalorder %s20, 1
      %p204 = por %p202, %p203
      %p205 = scmp.ne.s32.totalorder %s197, %s200
      %p206 = scmp.eq.s32.totalorder %s20, 0
      %p207 = por %p205, %p206
      %p208 = scmp.ne.s32.totalorder %s197, %s200
      %p209 = scmp.eq.s32.totalorder %s25, 1
      %p210 = por %p208, %p209
      %p211 = scmp.ne.s32.totalorder %s200, %s201
      %p212 = scmp.eq.s32.totalorder %s25, 0
      %p213 = por %p211, %p212
      %p214 = scmp.ne.s32.totalorder %s200, %s201
      %p215 = scmp.eq.s32.totalorder %s26, 1
      %p216 = por %p214, %p215
      %p218 = scmp.ne.s32.totalorder %s201, %s217
      %p219 = scmp.eq.s32.totalorder %s26, 0
      %p220 = por %p218, %p219
      %s221 = ssub.s32 %s27, %s39
      %p222 = scmp.eq.s32.totalorder %s221, 0
      %s224 = sadd.s32 %s223, 1
      %s225 = scalar_select %p222, %s223, %s224
      %p228 = pneg %p222
      %p229 = scmp.eq.s32.totalorder %s20, 1
      %p230 = por %p228, %p229
      %p231 = scmp.ne.s32.totalorder %s223, %s226
      %p232 = scmp.eq.s32.totalorder %s20, 0
      %p233 = por %p231, %p232
      %p234 = scmp.ne.s32.totalorder %s223, %s226
      %p235 = scmp.eq.s32.totalorder %s25, 1
      %p236 = por %p234, %p235
      %p237 = scmp.ne.s32.totalorder %s226, %s227
      %p238 = scmp.eq.s32.totalorder %s25, 0
      %p239 = por %p237, %p238
      %p240 = scmp.ne.s32.totalorder %s226, %s227
      %p241 = scmp.eq.s32.totalorder %s26, 1
      %p242 = por %p240, %p241
      %p244 = scmp.ne.s32.totalorder %s227, %s243
      %p245 = scmp.eq.s32.totalorder %s26, 0
      %p246 = por %p244, %p245
      %s247 = ssub.s32 %s27, %s39
      %p248 = scmp.eq.s32.totalorder %s247, 0
      %s250 = sadd.s32 %s249, 1
      %s251 = scalar_select %p248, %s249, %s250
      %p254 = pneg %p248
      %p255 = scmp.eq.s32.totalorder %s20, 1
      %p256 = por %p254, %p255
      %p257 = scmp.ne.s32.totalorder %s249, %s252
      %p258 = scmp.eq.s32.totalorder %s20, 0
      %p259 = por %p257, %p258
      %p260 = scmp.ne.s32.totalorder %s249, %s252
      %p261 = scmp.eq.s32.totalorder %s25, 1
      %p262 = por %p260, %p261
      %p263 = scmp.ne.s32.totalorder %s252, %s253
      %p264 = scmp.eq.s32.totalorder %s25, 0
      %p265 = por %p263, %p264
      %p266 = scmp.ne.s32.totalorder %s252, %s253
      %p267 = scmp.eq.s32.totalorder %s26, 1
      %p268 = por %p266, %p267
      %p270 = scmp.ne.s32.totalorder %s253, %s269
      %p271 = scmp.eq.s32.totalorder %s26, 0
      %p272 = por %p270, %p271
      %s273 = ssub.s32 %s27, %s39
      %p274 = scmp.eq.s32.totalorder %s273, 0
      %s276 = sadd.s32 %s275, 1
      %s277 = scalar_select %p274, %s275, %s276
      %p280 = pneg %p274
      %p281 = scmp.eq.s32.totalorder %s20, 1
      %p282 = por %p280, %p281
      %p283 = scmp.ne.s32.totalorder %s275, %s278
      %p284 = scmp.eq.s32.totalorder %s20, 0
      %p285 = por %p283, %p284
      %p286 = scmp.ne.s32.totalorder %s275, %s278
      %p287 = scmp.eq.s32.totalorder %s25, 1
      %p288 = por %p286, %p287
      %p289 = scmp.ne.s32.totalorder %s278, %s279
      %p290 = scmp.eq.s32.totalorder %s25, 0
      %p291 = por %p289, %p290
      %p292 = scmp.ne.s32.totalorder %s278, %s279
      %p293 = scmp.eq.s32.totalorder %s26, 1
      %p294 = por %p292, %p293
      %p296 = scmp.ne.s32.totalorder %s279, %s295
      %p297 = scmp.eq.s32.totalorder %s26, 0
      %p298 = por %p296, %p297
      %s299 = ssub.s32 %s27, %s39
      %s300 = ssub.s32 %s28, %s35
      %s301 = sor.u32 %s299, %s300
      %p302 = scmp.eq.s32.totalorder %s301, 0
      %s304 = sadd.s32 %s303, 1
      %s305 = scalar_select %p302, %s303, %s304
      %p308 = pneg %p302
      %p309 = scmp.eq.s32.totalorder %s20, 1
      %p310 = por %p308, %p309
      %p311 = scmp.ne.s32.totalorder %s303, %s306
      %p312 = scmp.eq.s32.totalorder %s20, 0
      %p313 = por %p311, %p312
      %p314 = scmp.ne.s32.totalorder %s303, %s306
      %p315 = scmp.eq.s32.totalorder %s25, 1
      %p316 = por %p314, %p315
      %p317 = scmp.ne.s32.totalorder %s306, %s307
      %p318 = scmp.eq.s32.totalorder %s25, 0
      %p319 = por %p317, %p318
      %p320 = scmp.ne.s32.totalorder %s306, %s307
      %p321 = scmp.eq.s32.totalorder %s26, 1
      %p322 = por %p320, %p321
      %p324 = scmp.ne.s32.totalorder %s307, %s323
      %p325 = scmp.eq.s32.totalorder %s26, 0
      %p326 = por %p324, %p325
      %p327 = scmp.le.s32.totalorder 1, %s20
      %p328 = scmp.lt.s32.totalorder %s20, 3
      %p329 = pnand %p327, %p328
      %p330 = pneg %p329
      // Predicated region
      $region9: #{tpu_custom_call.1} parent=5 // pred_check
        _
      $region10: #{tpu_custom_call.1} parent=5 // pred_check_branch
        %332 = sbr.rel (%p329) target = $region12
      $region11: #{tpu_custom_call.1} parent=5 // pred_region
        %s333 = ssub.s32 %s20, 1
        // Predicated region
        $region13: #{tpu_custom_call.1} parent=11 // pred_check
          %p334 = pneg %p53
        $region14: #{tpu_custom_call.1} parent=11 // pred_check_branch
          %336 = sbr.rel (%p334) target = $region16
        $region15: #{tpu_custom_call.1} parent=11 // pred_region
          _
        $region16: #{tpu_custom_call.1} parent=11 // pred_fallthru
          _
      $region12: #{tpu_custom_call.1} parent=5 // pred_fallthru
        _
      %p337 = scmp.lt.s32.totalorder %s20, 2
      // Predicated region
      $region17: #{tpu_custom_call.1} parent=5 // pred_check
        %p338 = pneg %p337
      $region18: #{tpu_custom_call.1} parent=5 // pred_check_branch
        %340 = sbr.rel (%p338) target = $region20
      $region19: #{tpu_custom_call.1} parent=5 // pred_region
        // Predicated region
        $region21: #{tpu_custom_call.1} parent=19 // pred_check
          %p341 = pneg %p75
        $region22: #{tpu_custom_call.1} parent=19 // pred_check_branch
          %343 = sbr.rel (%p341) target = $region24
        $region23: #{tpu_custom_call.1} parent=19 // pred_region
          %s344 = smul.u32 2, %s28
          %p345 = scmp.lt.s32.totalorder %s27, 1
          %s346 = scalar_select %p345, %s27, 1
          %p347 = scmp.lt.s32.totalorder %s344, 1
          %s348 = scalar_select %p347, %s344, 1
          %s349 = smul.addr %s346, 2
          %s350 = sadd.s32 %s348, %s349
          %s351 = smul.addr %s350, 4
          %s352 = scalar_lea.vmem %s1, %s351
          %s353 = smul.u32 2, %s28
        $region24: #{tpu_custom_call.1} parent=19 // pred_fallthru
          _
        // Predicated region
        $region25: #{tpu_custom_call.1} parent=19 // pred_check
          %p354 = pneg %p103
        $region26: #{tpu_custom_call.1} parent=19 // pred_check_branch
          %356 = sbr.rel (%p354) target = $region28
        $region27: #{tpu_custom_call.1} parent=19 // pred_region
          %s357 = smul.u32 2, %s28
          %p358 = scmp.lt.s32.totalorder %s27, 1
          %s359 = scalar_select %p358, %s27, 1
          %p360 = scmp.lt.s32.totalorder %s357, 1
          %s361 = scalar_select %p360, %s357, 1
          %s362 = smul.addr %s359, 2
          %s363 = sadd.s32 %s361, %s362
          %s364 = smul.addr %s363, 4
          %s365 = scalar_lea.vmem %s2, %s364
          %s366 = smul.u32 2, %s28
        $region28: #{tpu_custom_call.1} parent=19 // pred_fallthru
          _
        // Predicated region
        $region29: #{tpu_custom_call.1} parent=19 // pred_check
          %p367 = pneg %p129
        $region30: #{tpu_custom_call.1} parent=19 // pred_check_branch
          %369 = sbr.rel (%p367) target = $region32
        $region31: #{tpu_custom_call.1} parent=19 // pred_region
          %p370 = scmp.lt.s32.totalorder %s27, 1
          %s371 = scalar_select %p370, %s27, 1
          %s372 = smul.addr %s371, 16
          %s373 = smul.addr %s372, 4
          %s374 = scalar_lea.vmem %s3, %s373
        $region32: #{tpu_custom_call.1} parent=19 // pred_fallthru
          _
        // Predicated region
        $region33: #{tpu_custom_call.1} parent=19 // pred_check
          %p375 = pneg %p155
        $region34: #{tpu_custom_call.1} parent=19 // pred_check_branch
          %377 = sbr.rel (%p375) target = $region36
        $region35: #{tpu_custom_call.1} parent=19 // pred_region
          %p378 = scmp.lt.s32.totalorder %s27, 1
          %s379 = scalar_select %p378, %s27, 1
          %s380 = smul.addr %s379, 4
          %s381 = scalar_lea.vmem %s4, %s380
        $region36: #{tpu_custom_call.1} parent=19 // pred_fallthru
          _
        // Predicated region
        $region37: #{tpu_custom_call.1} parent=19 // pred_check
          %p382 = pneg %p181
        $region38: #{tpu_custom_call.1} parent=19 // pred_check_branch
          %384 = sbr.rel (%p382) target = $region40
        $region39: #{tpu_custom_call.1} parent=19 // pred_region
          %p385 = scmp.lt.s32.totalorder %s27, 1
          %s386 = scalar_select %p385, %s27, 1
          %s387 = scalar_lea.vmem %s5, %s386
        $region40: #{tpu_custom_call.1} parent=19 // pred_fallthru
          _
        // Predicated region
        $region41: #{tpu_custom_call.1} parent=19 // pred_check
          %p388 = pneg %p207
        $region42: #{tpu_custom_call.1} parent=19 // pred_check_branch
          %390 = sbr.rel (%p388) target = $region44
        $region43: #{tpu_custom_call.1} parent=19 // pred_region
          %p391 = scmp.lt.s32.totalorder %s27, 1
          %s392 = scalar_select %p391, %s27, 1
          %s393 = smul.addr %s392, 8
          %s394 = smul.addr %s393, 4
          %s395 = scalar_lea.vmem %s6, %s394
        $region44: #{tpu_custom_call.1} parent=19 // pred_fallthru
          _
        // Predicated region
        $region45: #{tpu_custom_call.1} parent=19 // pred_check
          %p396 = pneg %p233
        $region46: #{tpu_custom_call.1} parent=19 // pred_check_branch
          %398 = sbr.rel (%p396) target = $region48
        $region47: #{tpu_custom_call.1} parent=19 // pred_region
          %p399 = scmp.lt.s32.totalorder %s27, 1
          %s400 = scalar_select %p399, %s27, 1
          %s401 = scalar_lea.vmem %s7, %s400
        $region48: #{tpu_custom_call.1} parent=19 // pred_fallthru
          _
        // Predicated region
        $region49: #{tpu_custom_call.1} parent=19 // pred_check
          %p402 = pneg %p259
        $region50: #{tpu_custom_call.1} parent=19 // pred_check_branch
          %404 = sbr.rel (%p402) target = $region52
        $region51: #{tpu_custom_call.1} parent=19 // pred_region
          %p405 = scmp.lt.s32.totalorder %s27, 1
          %s406 = scalar_select %p405, %s27, 1
          %s407 = smul.addr %s406, 4
          %s408 = smul.addr %s407, 4
          %s409 = scalar_lea.vmem %s8, %s408
        $region52: #{tpu_custom_call.1} parent=19 // pred_fallthru
          _
        // Predicated region
        $region53: #{tpu_custom_call.1} parent=19 // pred_check
          %p410 = pneg %p285
        $region54: #{tpu_custom_call.1} parent=19 // pred_check_branch
          %412 = sbr.rel (%p410) target = $region56
        $region55: #{tpu_custom_call.1} parent=19 // pred_region
          %p413 = scmp.lt.s32.totalorder %s27, 1
          %s414 = scalar_select %p413, %s27, 1
          %s415 = smul.addr %s414, 2
          %s416 = scalar_lea.vmem %s9, %s415
        $region56: #{tpu_custom_call.1} parent=19 // pred_fallthru
          _
      $region20: #{tpu_custom_call.1} parent=5 // pred_fallthru
        _
      %p417 = scmp.le.s32.totalorder 1, %s20
      %p418 = scmp.lt.s32.totalorder %s20, 3
      %p419 = pnand %p417, %p418
      %p420 = pneg %p419
      // Predicated region
      $region57: #{tpu_custom_call.1} parent=5 // pred_check
        _
      $region58: #{tpu_custom_call.1} parent=5 // pred_check_branch
        %422 = sbr.rel (%p419) target = $region60
      $region59: #{tpu_custom_call.1} parent=5 // pred_region
        %s423 = ssub.s32 %s20, 1
        %p424 = pneg %p53
        %p425 = pneg %p50
        %s426 = smul.u32 2, %s30
        %p427 = scmp.lt.s32.totalorder %s29, 1
        %s428 = scalar_select %p427, %s29, 1
        %p429 = scmp.lt.s32.totalorder %s426, 1
        %s430 = scalar_select %p429, %s426, 1
        %s431 = smul.addr %s428, 2
        %s432 = sadd.s32 %s430, %s431
        %s433 = smul.addr %s432, 4
        %s434 = scalar_lea.vmem %s1, %s433
        %p435 = pneg %p81
        %p436 = pneg %p78
        %s437 = smul.u32 2, %s30
        %p438 = scmp.lt.s32.totalorder %s29, 1
        %s439 = scalar_select %p438, %s29, 1
        %p440 = scmp.lt.s32.totalorder %s437, 1
        %s441 = scalar_select %p440, %s437, 1
        %s442 = smul.addr %s439, 2
        %s443 = sadd.s32 %s441, %s442
        %s444 = smul.addr %s443, 4
        %s445 = scalar_lea.vmem %s2, %s444
        %p446 = pneg %p109
        %p447 = pneg %p106
        %p448 = scmp.lt.s32.totalorder %s29, 1
        %s449 = scalar_select %p448, %s29, 1
        %s450 = smul.addr %s449, 16
        %s451 = smul.addr %s450, 4
        %s452 = scalar_lea.vmem %s3, %s451
        %p453 = pneg %p135
        %p454 = pneg %p132
        %p455 = scmp.lt.s32.totalorder %s29, 1
        %s456 = scalar_select %p455, %s29, 1
        %s457 = smul.addr %s456, 4
        %s458 = scalar_lea.vmem %s4, %s457
        %p459 = pneg %p161
        %p460 = pneg %p158
        %p461 = scmp.lt.s32.totalorder %s29, 1
        %s462 = scalar_select %p461, %s29, 1
        %s463 = scalar_lea.vmem %s5, %s462
        %p464 = pneg %p187
        %p465 = pneg %p184
        %p466 = scmp.lt.s32.totalorder %s29, 1
        %s467 = scalar_select %p466, %s29, 1
        %s468 = smul.addr %s467, 8
        %s469 = smul.addr %s468, 4
        %s470 = scalar_lea.vmem %s6, %s469
        %p471 = pneg %p213
        %p472 = pneg %p210
        %p473 = scmp.lt.s32.totalorder %s29, 1
        %s474 = scalar_select %p473, %s29, 1
        %s475 = scalar_lea.vmem %s7, %s474
        %p476 = pneg %p239
        %p477 = pneg %p236
        %p478 = scmp.lt.s32.totalorder %s29, 1
        %s479 = scalar_select %p478, %s29, 1
        %s480 = smul.addr %s479, 4
        %s481 = smul.addr %s480, 4
        %s482 = scalar_lea.vmem %s8, %s481
        %p483 = pneg %p265
        %p484 = pneg %p262
        %p485 = scmp.lt.s32.totalorder %s29, 1
        %s486 = scalar_select %p485, %s29, 1
        %s487 = smul.addr %s486, 2
        %s488 = scalar_lea.vmem %s9, %s487
        %p489 = pneg %p291
        %p490 = pneg %p288
        %p491 = pneg %p319
        %p492 = pneg %p316
        %s493 = sand.u32 %s306, 1
        %s494 = scalar_lea.sflag [#allocation4], %s493
        %s495 = sand.u32 %s306, 1
        %s496 = smul.addr %s495, 32
        %s497 = scalar_lea.vmem [#allocation3], %s496
        %s498 = smul.u32 2, %s30
        %p499 = scmp.lt.s32.totalorder %s29, 1
        %s500 = scalar_select %p499, %s29, 1
        %p501 = scmp.lt.s32.totalorder %s498, 1
        %s502 = scalar_select %p501, %s498, 1
        %s503 = smul.addr %s500, 2
        %s504 = sadd.s32 %s502, %s503
        %s505 = smul.addr %s504, 4
        %s506 = scalar_lea.vmem %s1, %s505
        %s507 = smul.u32 2, %s30
        %s508 = smul.u32 2, %s30
        %p509 = scmp.lt.s32.totalorder %s29, 1
        %s510 = scalar_select %p509, %s29, 1
        %p511 = scmp.lt.s32.totalorder %s508, 1
        %s512 = scalar_select %p511, %s508, 1
        %s513 = smul.addr %s510, 2
        %s514 = sadd.s32 %s512, %s513
        %s515 = smul.addr %s514, 4
        %s516 = scalar_lea.vmem %s2, %s515
        %s517 = smul.u32 2, %s30
        %p518 = scmp.lt.s32.totalorder %s29, 1
        %s519 = scalar_select %p518, %s29, 1
        %s520 = smul.addr %s519, 16
        %s521 = smul.addr %s520, 4
        %s522 = scalar_lea.vmem %s3, %s521
        %p523 = scmp.lt.s32.totalorder %s29, 1
        %s524 = scalar_select %p523, %s29, 1
        %s525 = smul.addr %s524, 4
        %s526 = scalar_lea.vmem %s4, %s525
        %p527 = scmp.lt.s32.totalorder %s29, 1
        %s528 = scalar_select %p527, %s29, 1
        %s529 = scalar_lea.vmem %s5, %s528
        %p530 = scmp.lt.s32.totalorder %s29, 1
        %s531 = scalar_select %p530, %s29, 1
        %s532 = smul.addr %s531, 8
        %s533 = smul.addr %s532, 4
        %s534 = scalar_lea.vmem %s6, %s533
        %p535 = scmp.lt.s32.totalorder %s29, 1
        %s536 = scalar_select %p535, %s29, 1
        %s537 = scalar_lea.vmem %s7, %s536
        %p538 = scmp.lt.s32.totalorder %s29, 1
        %s539 = scalar_select %p538, %s29, 1
        %s540 = smul.addr %s539, 4
        %s541 = smul.addr %s540, 4
        %s542 = scalar_lea.vmem %s8, %s541
        %p543 = scmp.lt.s32.totalorder %s29, 1
        %s544 = scalar_select %p543, %s29, 1
        %s545 = smul.addr %s544, 2
        %s546 = scalar_lea.vmem %s9, %s545
        %s547 = smul.u32 2, %s30
        %s549 = sld [smem:[#allocation2]]
        %v550 = vld [vmem:[%s506] sm:$0xf]
        %v551 = vld [vmem:[%s506 + $0x4] sm:$0xf]
        %v552 = vld [vmem:[%s522] sm:$0xf]
        %v553 = vld [vmem:[%s522 + $0x4] sm:$0xf]
        %v554 = vld [vmem:[%s522 + $0x8] sm:$0xf]
        %v555 = vld [vmem:[%s522 + $0xc] sm:$0xf]
        %v556 = vld [vmem:[%s522 + $0x10] sm:$0xf]
        %v557 = vld [vmem:[%s522 + $0x14] sm:$0xf]
        %v558 = vld [vmem:[%s522 + $0x18] sm:$0xf]
        %v559 = vld [vmem:[%s522 + $0x1c] sm:$0xf]
        %v560 = vld [vmem:[%s522 + $0x20] sm:$0xf]
        %v561 = vld [vmem:[%s522 + $0x24] sm:$0xf]
        %v562 = vld [vmem:[%s522 + $0x28] sm:$0xf]
        %v563 = vld [vmem:[%s522 + $0x2c] sm:$0xf]
        %v564 = vld [vmem:[%s522 + $0x30] sm:$0xf]
        %v565 = vld [vmem:[%s522 + $0x34] sm:$0xf]
        %v566 = vld [vmem:[%s522 + $0x38] sm:$0xf]
        %v567 = vld [vmem:[%s522 + $0x3c] sm:$0xf]
        %v568 = vld [vmem:[%s516] sm:$0xf]
        %v569 = vld [vmem:[%s516 + $0x4] sm:$0xf]
        %v570 = vld [vmem:[%s526] sm:$0xf]
        %v573 = vunpack.c.l.b16 %v568
        %v574 = vunpack.c.l.b16 %v569
        %v575 = vpack.c.b16 %v574, %v573
        %vm576 = vcmask 64512
        %v578 = vsel %vm576, %v575, 0
        %vm580 = vcmask 1043456
        %v582 = vsel %vm580, %v570, 0
        %584 = vmatprep.subr.bf16.mxu0 0
        %585 = vmatpush1.bf16.msra.mxu0 %v582
        %586 = vmatprep.subr.bf16.mxu0 0
        %587 = vmatpush1.bf16.msra.mxu0 0
        %588 = vmatprep.subr.bf16.mxu0 0
        %589 = vmatpush1.bf16.msra.mxu0 0
        %590 = vmatprep.subr.bf16.mxu0 0
        %591 = vmatpush1.bf16.msra.mxu0 0
        %592 = vmatprep.subr.bf16.mxu0 0
        %593 = vmatpush1.bf16.msra.mxu0 0
        %594 = vmatprep.subr.bf16.mxu0 0
        %595 = vmatpush1.bf16.msra.mxu0 0
        %596 = vmatprep.subr.bf16.mxu0 0
        %597 = vmatpush1.bf16.msra.mxu0 0
        %598 = vmatprep.subr.bf16.mxu0 0
        %599 = vmatpush1.bf16.msra.mxu0 0
        %600 = vmatprep.subr.bf16.mxu0 0
        %601 = vmatpush1.bf16.msra.mxu0 0
        %602 = vmatprep.subr.bf16.mxu0 0
        %603 = vmatpush1.bf16.msra.mxu0 0
        %604 = vmatprep.subr.bf16.mxu0 0
        %605 = vmatpush1.bf16.msra.mxu0 0
        %606 = vmatprep.subr.bf16.mxu0 0
        %607 = vmatpush1.bf16.msra.mxu0 0
        %608 = vmatprep.subr.bf16.mxu0 0
        %609 = vmatpush1.bf16.msra.mxu0 0
        %610 = vmatprep.subr.bf16.mxu0 0
        %611 = vmatpush1.bf16.msra.mxu0 0
        %612 = vmatprep.subr.bf16.mxu0 0
        %613 = vmatpush1.bf16.msra.mxu0 0
        %614 = vmatprep.subr.bf16.mxu0 0
        %615 = vmatpush1.bf16.msra.mxu0 0
        %616 = vmatprep.mubr.bf16.mxu0 0
        %617 = vmatmul.mubr.bf16.gmra.mrb[0].mxu0 %v578
        %v618 = vpop.f32.mrb[0].mxu0
        %v619 = vadd.f32 0.0, %v618
        %v620 = vpop.f32.mrb[0].mxu0
        %v621 = vpop.f32.mrb[0].mxu0
        %v622 = vadd.f32 0.0, %v621
        %v623 = vpop.f32.mrb[0].mxu0
        %624 = vdwg.mxu0
        %v627 = vunpack.c.l.b16 %v550
        %v628 = vunpack.c.l.b16 %v551
        %v629 = vpack.c.b16 %v628, %v627
        %v647 = vunpack.c.l.b16 %v552
        %v648 = vunpack.c.l.b16 %v553
        %v649 = vunpack.c.l.b16 %v554
        %v650 = vunpack.c.l.b16 %v555
        %v651 = vunpack.c.l.b16 %v556
        %v652 = vunpack.c.l.b16 %v557
        %v653 = vunpack.c.l.b16 %v558
        %v654 = vunpack.c.l.b16 %v559
        %v655 = vunpack.c.l.b16 %v560
        %v656 = vunpack.c.l.b16 %v561
        %v657 = vunpack.c.l.b16 %v562
        %v658 = vunpack.c.l.b16 %v563
        %v659 = vunpack.c.l.b16 %v564
        %v660 = vunpack.c.l.b16 %v565
        %v661 = vunpack.c.l.b16 %v566
        %v662 = vunpack.c.l.b16 %v567
        %v663 = vpack.c.b16 %v648, %v647
        %v664 = vpack.c.b16 %v650, %v649
        %v665 = vpack.c.b16 %v652, %v651
        %v666 = vpack.c.b16 %v654, %v653
        %v667 = vpack.c.b16 %v656, %v655
        %v668 = vpack.c.b16 %v658, %v657
        %v669 = vpack.c.b16 %v660, %v659
        %v670 = vpack.c.b16 %v662, %v661
        %679 = vmatprep.subr.bf16.mxu0 0
        %680 = vmatpush1.bf16.msra.mxu0 %v663
        %681 = vmatprep.subr.bf16.mxu0 0
        %682 = vmatpush1.bf16.msra.mxu0 %v664
        %683 = vmatprep.subr.bf16.mxu0 0
        %684 = vmatpush1.bf16.msra.mxu0 %v665
        %685 = vmatprep.subr.bf16.mxu0 0
        %686 = vmatpush1.bf16.msra.mxu0 %v666
        %687 = vmatprep.subr.bf16.mxu0 0
        %688 = vmatpush1.bf16.msra.mxu0 %v667
        %689 = vmatprep.subr.bf16.mxu0 0
        %690 = vmatpush1.bf16.msra.mxu0 %v668
        %691 = vmatprep.subr.bf16.mxu0 0
        %692 = vmatpush1.bf16.msra.mxu0 %v669
        %693 = vmatprep.subr.bf16.mxu0 0
        %694 = vmatpush1.bf16.msra.mxu0 %v670
        %695 = vmatprep.subr.bf16.mxu0 0
        %696 = vmatpush1.bf16.msra.mxu0 0
        %697 = vmatprep.subr.bf16.mxu0 0
        %698 = vmatpush1.bf16.msra.mxu0 0
        %699 = vmatprep.subr.bf16.mxu0 0
        %700 = vmatpush1.bf16.msra.mxu0 0
        %701 = vmatprep.subr.bf16.mxu0 0
        %702 = vmatpush1.bf16.msra.mxu0 0
        %703 = vmatprep.subr.bf16.mxu0 0
        %704 = vmatpush1.bf16.msra.mxu0 0
        %705 = vmatprep.subr.bf16.mxu0 0
        %706 = vmatpush1.bf16.msra.mxu0 0
        %707 = vmatprep.subr.bf16.mxu0 0
        %708 = vmatpush1.bf16.msra.mxu0 0
        %709 = vmatprep.subr.bf16.mxu0 0
        %710 = vmatpush1.bf16.msra.mxu0 0
        %711 = vmatprep.mubr.bf16.mxu0 0
        %712 = vmatmul.mubr.bf16.gmra.mrb[0].mxu0 %v629
        %v713 = vpop.f32.mrb[0].mxu0
        %v714 = vadd.f32 %v619, %v713
        %v715 = vpop.f32.mrb[0].mxu0
        %v716 = vpop.f32.mrb[0].mxu0
        %v717 = vadd.f32 %v622, %v716
        %v718 = vpop.f32.mrb[0].mxu0
        %719 = vdwg.mxu0
        %v720 = vld [vmem:[%s529] sm:$0x1]
        %v722 = vlaneseq
        %v723 = vshrl.u32 %v722, 7
        %v724 = vsub.s32 0, %v723
        %v725 = vrot.slane %v720, %v724
        %v727 = vadd.f32 %v714, %v725
        %v728 = vadd.f32 %v717, %v725
        %v729 = vpack.c.bf16 %v728, %v727
        %v730 = vld [vmem:[%s534] sm:$0xf]
        %v731 = vld [vmem:[%s534 + $0x4] sm:$0xf]
        %v732 = vld [vmem:[%s534 + $0x8] sm:$0xf]
        %v733 = vld [vmem:[%s534 + $0xc] sm:$0xf]
        %v734 = vld [vmem:[%s534 + $0x10] sm:$0xf]
        %v735 = vld [vmem:[%s534 + $0x14] sm:$0xf]
        %v736 = vld [vmem:[%s534 + $0x18] sm:$0xf]
        %v737 = vld [vmem:[%s534 + $0x1c] sm:$0xf]
        %v738 = vld [vmem:[%s537] sm:$0x1]
        %v740 = vlaneseq
        %v741 = vshrl.u32 %v740, 7
        %v742 = vsub.s32 0, %v741
        %v743 = vrot.slane %v738, %v742
        %v753 = vunpack.c.l.b16 %v730
        %v754 = vunpack.c.l.b16 %v731
        %v755 = vunpack.c.l.b16 %v732
        %v756 = vunpack.c.l.b16 %v733
        %v757 = vunpack.c.l.b16 %v734
        %v758 = vunpack.c.l.b16 %v735
        %v759 = vunpack.c.l.b16 %v736
        %v760 = vunpack.c.l.b16 %v737
        %v761 = vpack.c.b16 %v754, %v753
        %v762 = vpack.c.b16 %v756, %v755
        %v763 = vpack.c.b16 %v758, %v757
        %v764 = vpack.c.b16 %v760, %v759
        %vm769 = vcmask 523264
        %v771 = vsel %vm769, %v729, 0
        %773 = vmatprep.subr.bf16.mxu0 0
        %774 = vmatpush1.bf16.msra.mxu0 %v761
        %775 = vmatprep.subr.bf16.mxu0 0
        %776 = vmatpush1.bf16.msra.mxu0 %v762
        %777 = vmatprep.subr.bf16.mxu0 0
        %778 = vmatpush1.bf16.msra.mxu0 %v763
        %779 = vmatprep.subr.bf16.mxu0 0
        %780 = vmatpush1.bf16.msra.mxu0 %v764
        %781 = vmatprep.subr.bf16.mxu0 0
        %782 = vmatpush1.bf16.msra.mxu0 0
        %783 = vmatprep.subr.bf16.mxu0 0
        %784 = vmatpush1.bf16.msra.mxu0 0
        %785 = vmatprep.subr.bf16.mxu0 0
        %786 = vmatpush1.bf16.msra.mxu0 0
        %787 = vmatprep.subr.bf16.mxu0 0
        %788 = vmatpush1.bf16.msra.mxu0 0
        %789 = vmatprep.subr.bf16.mxu0 0
        %790 = vmatpush1.bf16.msra.mxu0 0
        %791 = vmatprep.subr.bf16.mxu0 0
        %792 = vmatpush1.bf16.msra.mxu0 0
        %793 = vmatprep.subr.bf16.mxu0 0
        %794 = vmatpush1.bf16.msra.mxu0 0
        %795 = vmatprep.subr.bf16.mxu0 0
        %796 = vmatpush1.bf16.msra.mxu0 0
        %797 = vmatprep.subr.bf16.mxu0 0
        %798 = vmatpush1.bf16.msra.mxu0 0
        %799 = vmatprep.subr.bf16.mxu0 0
        %800 = vmatpush1.bf16.msra.mxu0 0
        %801 = vmatprep.subr.bf16.mxu0 0
        %802 = vmatpush1.bf16.msra.mxu0 0
        %803 = vmatprep.subr.bf16.mxu0 0
        %804 = vmatpush1.bf16.msra.mxu0 0
        %805 = vmatprep.mubr.bf16.mxu0 0
        %806 = vmatmul.mubr.bf16.gmra.mrb[0].mxu0 %v771
        %v807 = vpop.f32.mrb[0].mxu0
        %v808 = vadd.f32 %v743, %v807
        %v809 = vpop.f32.mrb[0].mxu0
        %v810 = vpop.f32.mrb[0].mxu0
        %v811 = vadd.f32 %v743, %v810
        %v812 = vpop.f32.mrb[0].mxu0
        %813 = vdwg.mxu0
        %v814 = vmax.f32 %v808, 0.0
        %v815 = vmax.f32 %v811, 0.0
        %v816 = vpack.c.bf16 %v815, %v814
        %v817 = vld [vmem:[%s542] sm:$0xff]
        %v818 = vld [vmem:[%s542 + $0x8] sm:$0xff]
        %v819 = vld [vmem:[%s546] sm:$0x3]
        %v821 = vlaneseq
        %v822 = vshrl.u32 %v821, 7
        %v823 = vsub.s32 0, %v822
        %v824 = vrot.slane %v819, %v823
        %v825 = vlaneseq
        %v826 = vshrl.u32 %v825, 7
        %v827 = vsub.s32 1, %v826
        %v828 = vrot.slane %v819, %v827
        %v833 = vunpack.c.l.b16 %v817
        %v834 = vunpack.c.h.b16 %v817
        %v835 = vunpack.c.l.b16 %v818
        %v836 = vunpack.c.h.b16 %v818
        %v837 = vpack.c.b16 %v835, %v833
        %v838 = vpack.c.b16 %v836, %v834
        %vm841 = vcmask 130048
        %v843 = vsel %vm841, %v816, 0
        %845 = vmatprep.subr.bf16.mxu0 %v838
        %846 = vmatpush1.bf16.msra.mxu0 %v837
        %847 = vmatprep.subr.bf16.mxu0 0
        %848 = vmatpush1.bf16.msra.mxu0 0
        %849 = vmatprep.subr.bf16.mxu0 0
        %850 = vmatpush1.bf16.msra.mxu0 0
        %851 = vmatprep.subr.bf16.mxu0 0
        %852 = vmatpush1.bf16.msra.mxu0 0
        %853 = vmatprep.subr.bf16.mxu0 0
        %854 = vmatpush1.bf16.msra.mxu0 0
        %855 = vmatprep.subr.bf16.mxu0 0
        %856 = vmatpush1.bf16.msra.mxu0 0
        %857 = vmatprep.subr.bf16.mxu0 0
        %858 = vmatpush1.bf16.msra.mxu0 0
        %859 = vmatprep.subr.bf16.mxu0 0
        %860 = vmatpush1.bf16.msra.mxu0 0
        %861 = vmatprep.subr.bf16.mxu0 0
        %862 = vmatpush1.bf16.msra.mxu0 0
        %863 = vmatprep.subr.bf16.mxu0 0
        %864 = vmatpush1.bf16.msra.mxu0 0
        %865 = vmatprep.subr.bf16.mxu0 0
        %866 = vmatpush1.bf16.msra.mxu0 0
        %867 = vmatprep.subr.bf16.mxu0 0
        %868 = vmatpush1.bf16.msra.mxu0 0
        %869 = vmatprep.subr.bf16.mxu0 0
        %870 = vmatpush1.bf16.msra.mxu0 0
        %871 = vmatprep.subr.bf16.mxu0 0
        %872 = vmatpush1.bf16.msra.mxu0 0
        %873 = vmatprep.subr.bf16.mxu0 0
        %874 = vmatpush1.bf16.msra.mxu0 0
        %875 = vmatprep.subr.bf16.mxu0 0
        %876 = vmatpush1.bf16.msra.mxu0 0
        %877 = vmatprep.mubr.bf16.mxu0 0
        %878 = vmatmul.mubr.bf16.gmra.mrb[0].mxu0 %v843
        %v879 = vpop.f32.mrb[0].mxu0
        %v880 = vadd.f32 %v824, %v879
        %v881 = vpop.f32.mrb[0].mxu0
        %v882 = vadd.f32 %v828, %v881
        %v883 = vpop.f32.mrb[0].mxu0
        %v884 = vadd.f32 %v824, %v883
        %v885 = vpop.f32.mrb[0].mxu0
        %v886 = vadd.f32 %v828, %v885
        %887 = vdwg.mxu0
        %v888 = vstv %s549
        %v889 = vmul.f32 %v880, %v888
        %v890 = vmul.f32 %v882, %v888
        %v891 = vmul.f32 %v884, %v888
        %v892 = vmul.f32 %v886, %v888
        %v893 = vlaneseq
        %v894 = vand.u32 %v893, 127
        %v895 = vadd.s32 %v894, 128
        %vm896 = vcmp.ge.s32.totalorder %v894, 128
        %vm897 = vcmp.ge.s32.totalorder %v895, 128
        %v898 = vsel %vm896, -inf, %v889
        %v899 = vsel %vm897, -inf, %v890
        %v900 = vsel %vm896, -inf, %v891
        %v901 = vsel %vm897, -inf, %v892
        %v902 = vmax.f32 %v898, %v899
        %903 = vmax.xlane.f32.xlu0 %v902
        %v904 = vpop.xlane.xlu0 %903
        %v905 = vmax.f32 %v900, %v901
        %906 = vmax.xlane.f32.xlu0 %v905
        %v907 = vpop.xlane.xlu0 %906
        %v908 = vsel %vm896, %v889, -inf
        %v909 = vsel %vm897, %v890, -inf
        %v910 = vsel %vm896, %v891, -inf
        %v911 = vsel %vm897, %v892, -inf
        %v912 = vmax.f32 %v908, %v909
        %913 = vmax.xlane.f32.xlu0 %v912
        %v914 = vpop.xlane.xlu0 %913
        %v915 = vmax.f32 %v910, %v911
        %916 = vmax.xlane.f32.xlu0 %v915
        %v917 = vpop.xlane.xlu0 %916
        %v918 = vsel %vm896, %v914, %v904
        %v919 = vsel %vm897, %v914, %v904
        %v920 = vsel %vm896, %v917, %v907
        %v921 = vsel %vm897, %v917, %v907
        %v922 = vsub.f32 %v889, %v918
        %v923 = vsub.f32 %v890, %v919
        %v924 = vsub.f32 %v891, %v920
        %v925 = vsub.f32 %v892, %v921
        %v926 = vmul.f32 %v922, 1.442695
        %v927 = vpow.pop %v926
        %v928 = vmul.f32 %v923, 1.442695
        %v929 = vpow.pop %v928
        %v930 = vmul.f32 %v924, 1.442695
        %v931 = vpow.pop %v930
        %v932 = vmul.f32 %v925, 1.442695
        %v933 = vpow.pop %v932
        %v934 = vsel %vm896, 0.0, %v927
        %v935 = vsel %vm897, 0.0, %v929
        %v936 = vsel %vm896, 0.0, %v931
        %v937 = vsel %vm897, 0.0, %v933
        %v938 = vadd.f32 %v934, %v935
        %939 = vadd.xlane.f32.xlu0 %v938
        %v940 = vpop.xlane.xlu0 %939
        %v941 = vadd.f32 %v936, %v937
        %942 = vadd.xlane.f32.xlu0 %v941
        %v943 = vpop.xlane.xlu0 %942
        %v944 = vsel %vm896, %v927, 0.0
        %v945 = vsel %vm897, %v929, 0.0
        %v946 = vsel %vm896, %v931, 0.0
        %v947 = vsel %vm897, %v933, 0.0
        %v948 = vadd.f32 %v944, %v945
        %949 = vadd.xlane.f32.xlu0 %v948
        %v950 = vpop.xlane.xlu0 %949
        %v951 = vadd.f32 %v946, %v947
        %952 = vadd.xlane.f32.xlu0 %v951
        %v953 = vpop.xlane.xlu0 %952
        %v954 = vrcp.pop %v940
        %v955 = vrcp.pop %v943
        %v956 = vrcp.pop %v950
        %v957 = vrcp.pop %v953
        %v958 = vsel %vm896, %v956, %v954
        %v959 = vsel %vm897, %v956, %v954
        %v960 = vsel %vm896, %v957, %v955
        %v961 = vsel %vm897, %v957, %v955
        %v962 = vmul.f32 %v927, %v958
        %v963 = vmul.f32 %v929, %v959
        %v964 = vmul.f32 %v931, %v960
        %v965 = vmul.f32 %v933, %v961
        %966 = vst [vmem:[%s497] sm:$0xff] %v962
        %967 = vst [vmem:[%s497 + $0x8] sm:$0xff] %v963
        %968 = vst [vmem:[%s497 + $0x10] sm:$0xff] %v964
        %969 = vst [vmem:[%s497 + $0x18] sm:$0xff] %v965
        %s970 = sand.u32 %s306, 1
        %s971 = scalar_lea.sflag [#allocation4], %s970
        %s972 = sand.u32 %s306, 1
        %s973 = smul.addr %s972, 32
        %s974 = scalar_lea.vmem [#allocation3], %s973
        // Predicated region
        $region61: #{tpu_custom_call.1} parent=59 // pred_check
          %p975 = pneg %p316
        $region62: #{tpu_custom_call.1} parent=59 // pred_check_branch
          %977 = sbr.rel (%p975) target = $region64
        $region63: #{tpu_custom_call.1} parent=59 // pred_region
          %s978 = smul.u32 2, %s30
          %s980 = ssub.s32 512, 512
          %981 = vsyncadd %s971, %s980
          %s982 = smul.addr %s978, 2
          %s983 = smul.addr %s29, 4
          %s984 = sadd.s32 %s982, %s983
          %s985 = smul.addr %s984, 128
          %s986 = scalar_lea.hbm %s10, %s985
          %s987 = sshll.u32 %s974, 4
          %s988 = int_to_ptr.vmem [resolvable:$true] %s987
          %993 = dma.vmem_to_hbm [thread:$0]  %s988, 512, %s986, %s971, 256, 256, 16
        $region64: #{tpu_custom_call.1} parent=59 // pred_fallthru
          _
      $region60: #{tpu_custom_call.1} parent=5 // pred_fallthru
        _
      %p994 = scmp.le.s32.totalorder 2, %s20
      // Predicated region
      $region65: #{tpu_custom_call.1} parent=5 // pred_check
        %p995 = pneg %p994
      $region66: #{tpu_custom_call.1} parent=5 // pred_check_branch
        %997 = sbr.rel (%p995) target = $region68
      $region67: #{tpu_custom_call.1} parent=5 // pred_region
        %s998 = ssub.s32 %s20, 2
        // Predicated region
        $region69: #{tpu_custom_call.1} parent=67 // pred_check
          %p999 = pneg %p322
        $region70: #{tpu_custom_call.1} parent=67 // pred_check_branch
          %1001 = sbr.rel (%p999) target = $region72
        $region71: #{tpu_custom_call.1} parent=67 // pred_region
          %s1002 = sand.u32 %s307, 1
          %s1003 = scalar_lea.sflag [#allocation4], %s1002
          %s1004 = sand.u32 %s307, 1
          %s1005 = smul.addr %s1004, 32
          %s1006 = scalar_lea.vmem [#allocation3], %s1005
          %1007 = dma.done %s1003, 512
        $region72: #{tpu_custom_call.1} parent=67 // pred_fallthru
          _
      $region68: #{tpu_custom_call.1} parent=5 // pred_fallthru
        _
    $region6: #{tpu_custom_call.1} parent=1 // loop_footer
      %s24 = sadd.s32 1, %s20
    $region7: #{tpu_custom_call.1} parent=1 // loop_footer_branch
      %19 = sbr.rel target = $region3
    $region8: #{tpu_custom_call.1} parent=1 // loop_exit
      _
    %1008 = vsyncpa [#allocation4], 1
    %s1009 = scalar_lea.sflag [#allocation4], 1
    %1010 = vsyncpa %s1009, 1

</llo_original>
